<compile_context>
chip_gen: v5e
topology: v5e:2x2
jax: 0.10.0
libtpu: 0.0.40
codegen_flags: <defaults>
</compile_context>

<pallas_src>
import functools
import math

import jax
import jax.numpy as jnp
import numpy as np
from jax.experimental import pallas as pl
from jax.experimental.pallas import tpu as pltpu


# --------------------------------------------------------------------------
# In-kernel helpers
# --------------------------------------------------------------------------
def _group_norm_silu(y, gamma, beta, groups, eps):
    """GroupNorm(groups) + SiLU for one sample laid out as (H*W, C), f32."""
    m, c = y.shape
    cg = c // groups
    ch = jax.lax.broadcasted_iota(jnp.int32, (m, c), 1)
    out = jnp.zeros_like(y)
    cnt = float(m * cg)
    for g in range(groups):  # groups == 2, statically unrolled
        mask = jnp.logical_and(ch >= g * cg, ch < (g + 1) * cg).astype(jnp.float32)
        mu = jnp.sum(y * mask, keepdims=True) / cnt          # (1, 1)
        diff = (y - mu) * mask
        var = jnp.sum(diff * diff, keepdims=True) / cnt       # (1, 1)
        out = out + mask * ((y - mu) * jax.lax.rsqrt(var + eps))
    out = out * gamma + beta                                   # (1, C) broadcast
    return out * (1.0 / (1.0 + jnp.exp(-out)))                 # SiLU


# --------------------------------------------------------------------------
# Pallas kernels
# --------------------------------------------------------------------------
def _conv_kernel(*refs, K, has_residual, fuse_gn, groups, eps):
    """KxK stride-1 conv on a pre-padded NHWC sample + bias, with optional
    fused residual add (before the conv) and fused GroupNorm+SiLU (after)."""
    idx = 0
    x_ref = refs[idx]; idx += 1
    r_ref = None
    if has_residual:
        r_ref = refs[idx]; idx += 1
    w_ref = refs[idx]; b_ref = refs[idx + 1]; idx += 2
    gm_ref = bt_ref = None
    if fuse_gn:
        gm_ref = refs[idx]; bt_ref = refs[idx + 1]; idx += 2
    o_ref = refs[idx]

    _, hp, wp, cin = x_ref.shape
    _, h, w, cout = o_ref.shape

    x = x_ref[0].astype(jnp.float32)                 # (Hp, Wp, Cin)
    if has_residual:
        x = x + r_ref[0].astype(jnp.float32)         # fused `hid + enc1`

    acc = jnp.zeros((h * w, cout), jnp.float32)
    for ky in range(K):                              # K*K taps, unrolled
        for kx in range(K):
            patch = x[ky:ky + h, kx:kx + w, :].reshape(h * w, cin)
            acc = acc + jnp.dot(patch, w_ref[ky * K + kx],
                                preferred_element_type=jnp.float32)
    acc = acc + b_ref[...]                           # (1, Cout) broadcast

    if fuse_gn:
        acc = _group_norm_silu(acc, gm_ref[...], bt_ref[...], groups, eps)

    o_ref[0] = acc.reshape(h, w, cout).astype(o_ref.dtype)


def _gn_silu_kernel(x_ref, gm_ref, bt_ref, o_ref, *, groups, eps):
    _, h, w, c = x_ref.shape
    y = x_ref[0].astype(jnp.float32).reshape(h * w, c)
    y = _group_norm_silu(y, gm_ref[...], bt_ref[...], groups, eps)
    o_ref[0] = y.reshape(h, w, c).astype(o_ref.dtype)


# --------------------------------------------------------------------------
# Wrappers around pallas_call
# --------------------------------------------------------------------------
def conv2d_pallas(x, w, b, *, K, residual=None, gamma=None, beta=None,
                  groups=2, eps=1e-5):
    """x: (N,H,W,Cin) NHWC. w: (K*K,Cin,Cout). b/gamma/beta: (1, Cout)."""
    n, h, wd, cin = x.shape
    cout = w.shape[-1]
    pad = K // 2
    if pad:
        cfg = ((0, 0), (pad, pad), (pad, pad), (0, 0))
        x = jnp.pad(x, cfg)
        if residual is not None:
            residual = jnp.pad(residual, cfg)
    hp, wp = h + 2 * pad, wd + 2 * pad

    fuse_gn = gamma is not None
    has_residual = residual is not None

    args = [x]
    in_specs = [pl.BlockSpec((1, hp, wp, cin), lambda i: (i, 0, 0, 0))]
    if has_residual:
        args.append(residual)
        in_specs.append(pl.BlockSpec((1, hp, wp, cin), lambda i: (i, 0, 0, 0)))
    args += [w, b]
    in_specs += [pl.BlockSpec((K * K, cin, cout), lambda i: (0, 0, 0)),
                 pl.BlockSpec((1, cout), lambda i: (0, 0))]
    if fuse_gn:
        args += [gamma, beta]
        in_specs += [pl.BlockSpec((1, cout), lambda i: (0, 0)),
                     pl.BlockSpec((1, cout), lambda i: (0, 0))]

    kernel = functools.partial(_conv_kernel, K=K, has_residual=has_residual,
                               fuse_gn=fuse_gn, groups=groups, eps=eps)
    return pl.pallas_call(
        kernel,
        out_shape=jax.ShapeDtypeStruct((n, h, wd, cout), x.dtype),
        grid_spec=pltpu.PrefetchScalarGridSpec(
            num_scalar_prefetch=0,
            grid=(n,),
            in_specs=in_specs,
            out_specs=pl.BlockSpec((1, h, wd, cout), lambda i: (i, 0, 0, 0)),
        ),
        compiler_params=pltpu.CompilerParams(
            dimension_semantics=("parallel",)),
    )(*args)


def gn_silu_pallas(x, gamma, beta, *, groups=2, eps=1e-5):
    n, h, w, c = x.shape
    kernel = functools.partial(_gn_silu_kernel, groups=groups, eps=eps)
    return pl.pallas_call(
        kernel,
        out_shape=jax.ShapeDtypeStruct((n, h, w, c), x.dtype),
        grid_spec=pltpu.PrefetchScalarGridSpec(
            num_scalar_prefetch=0,
            grid=(n,),
            in_specs=[pl.BlockSpec((1, h, w, c), lambda i: (i, 0, 0, 0)),
                      pl.BlockSpec((1, c), lambda i: (0, 0)),
                      pl.BlockSpec((1, c), lambda i: (0, 0))],
            out_specs=pl.BlockSpec((1, h, w, c), lambda i: (i, 0, 0, 0)),
        ),
        compiler_params=pltpu.CompilerParams(
            dimension_semantics=("parallel",)),
    )(x, gamma, beta)


def pixel_shuffle_nhwc(x, r=2):
    """NHWC PixelShuffle matching torch (channel k = c*r*r + i*r + j)."""
    n, h, w, c4 = x.shape
    c = c4 // (r * r)
    x = x.reshape(n, h, w, c, r, r)
    x = x.transpose(0, 1, 4, 2, 5, 3)       # (n, h, i, w, j, c)
    return x.reshape(n, h * r, w * r, c)


def sampling_generator(N, reverse=False):
    samplings = [False, True] * (N // 2)
    if reverse:
        return list(reversed(samplings[:N]))
    return samplings[:N]


# --------------------------------------------------------------------------
# Decoder module (parameters + forward)
# --------------------------------------------------------------------------
class PallasDecoder:
    """Pallas implementation of the SimVP Decoder forward."""

    def __init__(self, C_hid, C_out, N_S, spatio_kernel, key):
        self.K = spatio_kernel
        self.layers = []
        for ups in sampling_generator(N_S, reverse=True):
            c_conv = C_hid * 4 if ups else C_hid
            key, wk = jax.random.split(key)
            # trunc_normal_(std=0.02) ~ N(0, 0.02) at these bounds; bias -> 0
            w = 0.02 * jax.random.normal(
                wk, (spatio_kernel * spatio_kernel, C_hid, c_conv), jnp.float32)
            self.layers.append(dict(
                ups=ups, w=w,
                b=jnp.zeros((1, c_conv), jnp.float32),
                gamma=jnp.ones((1, C_hid), jnp.float32),
                beta=jnp.zeros((1, C_hid), jnp.float32)))
        key, wk, bk = jax.random.split(key, 3)
        bound = 1.0 / math.sqrt(C_hid)
        self.readout_w = jax.random.uniform(
            wk, (1, C_hid, C_out), jnp.float32, -bound, bound)
        self.readout_b = jax.random.uniform(
            bk, (1, C_out), jnp.float32, -bound, bound)

    def __call__(self, hid, enc1):
        """hid: (N, C_hid, H, W), enc1: (N, C_hid, H_out, W_out) — NCHW."""
        x = jnp.transpose(hid, (0, 2, 3, 1))      # NHWC internally
        e1 = jnp.transpose(enc1, (0, 2, 3, 1))
        last = len(self.layers) - 1
        for i, p in enumerate(self.layers):
            res = e1 if i == last else None        # Y = dec[-1](hid + enc1)
            if p["ups"]:
                y = conv2d_pallas(x, p["w"], p["b"], K=self.K, residual=res)
                y = pixel_shuffle_nhwc(y, 2)
                x = gn_silu_pallas(y, p["gamma"], p["beta"])
            else:
                x = conv2d_pallas(x, p["w"], p["b"], K=self.K, residual=res,
                                  gamma=p["gamma"], beta=p["beta"])
        y = conv2d_pallas(x, self.readout_w, self.readout_b, K=1)
        return jnp.transpose(y, (0, 3, 1, 2))      # back to NCHW


# --------------------------------------------------------------------------
# Pure-JAX reference (mirror of the torch forward) for a sanity check
# --------------------------------------------------------------------------
def _reference_decoder(dec, hid, enc1):
    def conv(x, w, b, K):
        cin, cout = w.shape[1], w.shape[2]
        w4 = w.reshape(K, K, cin, cout)
        pad = K // 2
        y = jax.lax.conv_general_dilated(
            x, w4, (1, 1), ((pad, pad), (pad, pad)),
            dimension_numbers=("NHWC", "HWIO", "NHWC"))
        return y + b.reshape(1, 1, 1, cout)

    def gn_silu(x, gamma, beta, groups=2, eps=1e-5):
        n, h, w, c = x.shape
        xg = x.reshape(n, h, w, groups, c // groups)
        mu = xg.mean(axis=(1, 2, 4), keepdims=True)
        var = ((xg - mu) ** 2).mean(axis=(1, 2, 4), keepdims=True)
        xn = ((xg - mu) * jax.lax.rsqrt(var + eps)).reshape(n, h, w, c)
        y = xn * gamma.reshape(1, 1, 1, c) + beta.reshape(1, 1, 1, c)
        return y * (1.0 / (1.0 + jnp.exp(-y)))

    x = jnp.transpose(hid, (0, 2, 3, 1))
    e1 = jnp.transpose(enc1, (0, 2, 3, 1))
    last = len(dec.layers) - 1
    for i, p in enumerate(dec.layers):
        if i == last:
            x = x + e1
        y = conv(x, p["w"], p["b"], dec.K)
        if p["ups"]:
            y = pixel_shuffle_nhwc(y, 2)
        x = gn_silu(y, p["gamma"], p["beta"])
    y = conv(x, dec.readout_w, dec.readout_b, 1)
    return jnp.transpose(y, (0, 3, 1, 2))


# --------------------------------------------------------------------------
if __name__ == "__main__":
    key = jax.random.PRNGKey(0)
    N, C_hid, C_out, N_S, K = 2, 16, 4, 2, 3
    H = W = 8

    k_hid, k_enc, k_par = jax.random.split(key, 3)
    hid = jax.random.normal(k_hid, (N, C_hid, H, W), jnp.float32)
    # N_S=2 -> one upsampling stage -> enc1 lives at 2x spatial resolution.
    enc1 = jax.random.normal(k_enc, (N, C_hid, 2 * H, 2 * W), jnp.float32)

    dec = PallasDecoder(C_hid, C_out, N_S, K, k_par)
    out = jax.block_until_ready(dec(hid, enc1))
    assert out.shape == (N, C_out, 2 * H, 2 * W), out.shape

    ref = jax.block_until_ready(_reference_decoder(dec, hid, enc1))
    err = float(jnp.max(jnp.abs(out - ref)))
    if not np.isfinite(err) or err > 1e-2:
        raise SystemExit(f"Decoder Pallas output mismatch vs reference: max|diff|={err}")
    print("KERNEL_OK")
</pallas_src>

<mosaic_0001>
module attributes {stable_mosaic.version = 11 : i64} {
  func.func @_conv_kernel(%arg0: i32, %arg1: memref<1x10x10x16xf32, #tpu.memory_space<vmem>>, %arg2: memref<9x16x64xf32, #tpu.memory_space<vmem>>, %arg3: memref<1x64xf32, #tpu.memory_space<vmem>>, %arg4: memref<1x8x8x64xf32, #tpu.memory_space<vmem>>) attributes {dimension_semantics = [#tpu.dimension_semantics<parallel>], iteration_bounds = array<i64: 2>, scalar_prefetch = 0 : i64, scratch_operands = 0 : i64, tpu.core_type = #tpu.core_type<tc>, window_params = [{transform_indices = @transform_0, window_bounds = array<i64: 1, 10, 10, 16>}, {pipeline_mode = #tpu.pipeline_mode<synchronous>, transform_indices = @transform_1, window_bounds = array<i64: 9, 16, 64>}, {pipeline_mode = #tpu.pipeline_mode<synchronous>, transform_indices = @transform_2, window_bounds = array<i64: 1, 64>}, {transform_indices = @transform_3, window_bounds = array<i64: 1, 8, 8, 64>}]} {
    %c0 = arith.constant 0 : index
    %c0_0 = arith.constant 0 : index
    %c0_1 = arith.constant 0 : index
    %c0_2 = arith.constant 0 : index
    %0 = vector.load %arg1[%c0, %c0_0, %c0_1, %c0_2] : memref<1x10x10x16xf32, #tpu.memory_space<vmem>>, vector<1x10x10x16xf32>
    %1 = vector.shape_cast %0 : vector<1x10x10x16xf32> to vector<10x10x16xf32>
    %cst = arith.constant 0.000000e+00 : f32
    %2 = vector.broadcast %cst : f32 to vector<64x64xf32>
    %3 = vector.extract_strided_slice %1 {offsets = [0, 0, 0], sizes = [8, 8, 16], strides = [1, 1, 1]} : vector<10x10x16xf32> to vector<8x8x16xf32>
    %4 = vector.shape_cast %3 : vector<8x8x16xf32> to vector<64x16xf32>
    %c0_3 = arith.constant 0 : index
    %c0_4 = arith.constant 0 : index
    %c0_5 = arith.constant 0 : index
    %5 = vector.load %arg2[%c0_3, %c0_4, %c0_5] : memref<9x16x64xf32, #tpu.memory_space<vmem>>, vector<1x16x64xf32>
    %6 = vector.shape_cast %5 : vector<1x16x64xf32> to vector<16x64xf32>
    %cst_6 = arith.constant dense<0.000000e+00> : vector<64x64xf32>
    %7 = tpu.matmul %4, %6, %cst_6 {dimension_numbers = #tpu.dot_dimension_numbers<[1], [0], [0], [1], [0, 0, 1, 1], [], []>} : vector<64x16xf32>, vector<16x64xf32>, vector<64x64xf32> -> vector<64x64xf32>
    %8 = arith.addf %2, %7 : vector<64x64xf32>
    %9 = vector.extract_strided_slice %1 {offsets = [0, 1, 0], sizes = [8, 8, 16], strides = [1, 1, 1]} : vector<10x10x16xf32> to vector<8x8x16xf32>
    %10 = vector.shape_cast %9 : vector<8x8x16xf32> to vector<64x16xf32>
    %c1 = arith.constant 1 : index
    %c0_7 = arith.constant 0 : index
    %c0_8 = arith.constant 0 : index
    %11 = vector.load %arg2[%c1, %c0_7, %c0_8] : memref<9x16x64xf32, #tpu.memory_space<vmem>>, vector<1x16x64xf32>
    %12 = vector.shape_cast %11 : vector<1x16x64xf32> to vector<16x64xf32>
    %cst_9 = arith.constant dense<0.000000e+00> : vector<64x64xf32>
    %13 = tpu.matmul %10, %12, %cst_9 {dimension_numbers = #tpu.dot_dimension_numbers<[1], [0], [0], [1], [0, 0, 1, 1], [], []>} : vector<64x16xf32>, vector<16x64xf32>, vector<64x64xf32> -> vector<64x64xf32>
    %14 = arith.addf %8, %13 : vector<64x64xf32>
    %15 = vector.extract_strided_slice %1 {offsets = [0, 2, 0], sizes = [8, 8, 16], strides = [1, 1, 1]} : vector<10x10x16xf32> to vector<8x8x16xf32>
    %16 = vector.shape_cast %15 : vector<8x8x16xf32> to vector<64x16xf32>
    %c2 = arith.constant 2 : index
    %c0_10 = arith.constant 0 : index
    %c0_11 = arith.constant 0 : index
    %17 = vector.load %arg2[%c2, %c0_10, %c0_11] : memref<9x16x64xf32, #tpu.memory_space<vmem>>, vector<1x16x64xf32>
    %18 = vector.shape_cast %17 : vector<1x16x64xf32> to vector<16x64xf32>
    %cst_12 = arith.constant dense<0.000000e+00> : vector<64x64xf32>
    %19 = tpu.matmul %16, %18, %cst_12 {dimension_numbers = #tpu.dot_dimension_numbers<[1], [0], [0], [1], [0, 0, 1, 1], [], []>} : vector<64x16xf32>, vector<16x64xf32>, vector<64x64xf32> -> vector<64x64xf32>
    %20 = arith.addf %14, %19 : vector<64x64xf32>
    %21 = vector.extract_strided_slice %1 {offsets = [1, 0, 0], sizes = [8, 8, 16], strides = [1, 1, 1]} : vector<10x10x16xf32> to vector<8x8x16xf32>
    %22 = vector.shape_cast %21 : vector<8x8x16xf32> to vector<64x16xf32>
    %c3 = arith.constant 3 : index
    %c0_13 = arith.constant 0 : index
    %c0_14 = arith.constant 0 : index
    %23 = vector.load %arg2[%c3, %c0_13, %c0_14] : memref<9x16x64xf32, #tpu.memory_space<vmem>>, vector<1x16x64xf32>
    %24 = vector.shape_cast %23 : vector<1x16x64xf32> to vector<16x64xf32>
    %cst_15 = arith.constant dense<0.000000e+00> : vector<64x64xf32>
    %25 = tpu.matmul %22, %24, %cst_15 {dimension_numbers = #tpu.dot_dimension_numbers<[1], [0], [0], [1], [0, 0, 1, 1], [], []>} : vector<64x16xf32>, vector<16x64xf32>, vector<64x64xf32> -> vector<64x64xf32>
    %26 = arith.addf %20, %25 : vector<64x64xf32>
    %27 = vector.extract_strided_slice %1 {offsets = [1, 1, 0], sizes = [8, 8, 16], strides = [1, 1, 1]} : vector<10x10x16xf32> to vector<8x8x16xf32>
    %28 = vector.shape_cast %27 : vector<8x8x16xf32> to vector<64x16xf32>
    %c4 = arith.constant 4 : index
    %c0_16 = arith.constant 0 : index
    %c0_17 = arith.constant 0 : index
    %29 = vector.load %arg2[%c4, %c0_16, %c0_17] : memref<9x16x64xf32, #tpu.memory_space<vmem>>, vector<1x16x64xf32>
    %30 = vector.shape_cast %29 : vector<1x16x64xf32> to vector<16x64xf32>
    %cst_18 = arith.constant dense<0.000000e+00> : vector<64x64xf32>
    %31 = tpu.matmul %28, %30, %cst_18 {dimension_numbers = #tpu.dot_dimension_numbers<[1], [0], [0], [1], [0, 0, 1, 1], [], []>} : vector<64x16xf32>, vector<16x64xf32>, vector<64x64xf32> -> vector<64x64xf32>
    %32 = arith.addf %26, %31 : vector<64x64xf32>
    %33 = vector.extract_strided_slice %1 {offsets = [1, 2, 0], sizes = [8, 8, 16], strides = [1, 1, 1]} : vector<10x10x16xf32> to vector<8x8x16xf32>
    %34 = vector.shape_cast %33 : vector<8x8x16xf32> to vector<64x16xf32>
    %c5 = arith.constant 5 : index
    %c0_19 = arith.constant 0 : index
    %c0_20 = arith.constant 0 : index
    %35 = vector.load %arg2[%c5, %c0_19, %c0_20] : memref<9x16x64xf32, #tpu.memory_space<vmem>>, vector<1x16x64xf32>
    %36 = vector.shape_cast %35 : vector<1x16x64xf32> to vector<16x64xf32>
    %cst_21 = arith.constant dense<0.000000e+00> : vector<64x64xf32>
    %37 = tpu.matmul %34, %36, %cst_21 {dimension_numbers = #tpu.dot_dimension_numbers<[1], [0], [0], [1], [0, 0, 1, 1], [], []>} : vector<64x16xf32>, vector<16x64xf32>, vector<64x64xf32> -> vector<64x64xf32>
    %38 = arith.addf %32, %37 : vector<64x64xf32>
    %39 = vector.extract_strided_slice %1 {offsets = [2, 0, 0], sizes = [8, 8, 16], strides = [1, 1, 1]} : vector<10x10x16xf32> to vector<8x8x16xf32>
    %40 = vector.shape_cast %39 : vector<8x8x16xf32> to vector<64x16xf32>
    %c6 = arith.constant 6 : index
    %c0_22 = arith.constant 0 : index
    %c0_23 = arith.constant 0 : index
    %41 = vector.load %arg2[%c6, %c0_22, %c0_23] : memref<9x16x64xf32, #tpu.memory_space<vmem>>, vector<1x16x64xf32>
    %42 = vector.shape_cast %41 : vector<1x16x64xf32> to vector<16x64xf32>
    %cst_24 = arith.constant dense<0.000000e+00> : vector<64x64xf32>
    %43 = tpu.matmul %40, %42, %cst_24 {dimension_numbers = #tpu.dot_dimension_numbers<[1], [0], [0], [1], [0, 0, 1, 1], [], []>} : vector<64x16xf32>, vector<16x64xf32>, vector<64x64xf32> -> vector<64x64xf32>
    %44 = arith.addf %38, %43 : vector<64x64xf32>
    %45 = vector.extract_strided_slice %1 {offsets = [2, 1, 0], sizes = [8, 8, 16], strides = [1, 1, 1]} : vector<10x10x16xf32> to vector<8x8x16xf32>
    %46 = vector.shape_cast %45 : vector<8x8x16xf32> to vector<64x16xf32>
    %c7 = arith.constant 7 : index
    %c0_25 = arith.constant 0 : index
    %c0_26 = arith.constant 0 : index
    %47 = vector.load %arg2[%c7, %c0_25, %c0_26] : memref<9x16x64xf32, #tpu.memory_space<vmem>>, vector<1x16x64xf32>
    %48 = vector.shape_cast %47 : vector<1x16x64xf32> to vector<16x64xf32>
    %cst_27 = arith.constant dense<0.000000e+00> : vector<64x64xf32>
    %49 = tpu.matmul %46, %48, %cst_27 {dimension_numbers = #tpu.dot_dimension_numbers<[1], [0], [0], [1], [0, 0, 1, 1], [], []>} : vector<64x16xf32>, vector<16x64xf32>, vector<64x64xf32> -> vector<64x64xf32>
    %50 = arith.addf %44, %49 : vector<64x64xf32>
    %51 = vector.extract_strided_slice %1 {offsets = [2, 2, 0], sizes = [8, 8, 16], strides = [1, 1, 1]} : vector<10x10x16xf32> to vector<8x8x16xf32>
    %52 = vector.shape_cast %51 : vector<8x8x16xf32> to vector<64x16xf32>
    %c8 = arith.constant 8 : index
    %c0_28 = arith.constant 0 : index
    %c0_29 = arith.constant 0 : index
    %53 = vector.load %arg2[%c8, %c0_28, %c0_29] : memref<9x16x64xf32, #tpu.memory_space<vmem>>, vector<1x16x64xf32>
    %54 = vector.shape_cast %53 : vector<1x16x64xf32> to vector<16x64xf32>
    %cst_30 = arith.constant dense<0.000000e+00> : vector<64x64xf32>
    %55 = tpu.matmul %52, %54, %cst_30 {dimension_numbers = #tpu.dot_dimension_numbers<[1], [0], [0], [1], [0, 0, 1, 1], [], []>} : vector<64x16xf32>, vector<16x64xf32>, vector<64x64xf32> -> vector<64x64xf32>
    %56 = arith.addf %50, %55 : vector<64x64xf32>
    %c0_31 = arith.constant 0 : index
    %c0_32 = arith.constant 0 : index
    %57 = vector.load %arg3[%c0_31, %c0_32] : memref<1x64xf32, #tpu.memory_space<vmem>>, vector<1x64xf32>
    %58 = vector.broadcast %57 : vector<1x64xf32> to vector<64x64xf32>
    %59 = arith.addf %56, %58 : vector<64x64xf32>
    %60 = vector.shape_cast %59 : vector<64x64xf32> to vector<8x8x64xf32>
    %c0_33 = arith.constant 0 : index
    %c0_34 = arith.constant 0 : index
    %c0_35 = arith.constant 0 : index
    %c0_36 = arith.constant 0 : index
    %61 = vector.load %arg4[%c0_33, %c0_34, %c0_35, %c0_36] : memref<1x8x8x64xf32, #tpu.memory_space<vmem>>, vector<1x8x8x64xf32>
    %62 = vector.shape_cast %61 : vector<1x8x8x64xf32> to vector<8x8x64xf32>
    %63 = vector.shape_cast %60 : vector<8x8x64xf32> to vector<1x8x8x64xf32>
    tpu.vector_store %arg4[%c0_33, %c0_34, %c0_35, %c0_36], %63 {strides = array<i32>} : memref<1x8x8x64xf32, #tpu.memory_space<vmem>>, vector<1x8x8x64xf32>,
    return
  }
  func.func @transform_0(%arg0: i32) -> (i32, i32, i32, i32) {
    %c0_i32 = arith.constant 0 : i32
    %c0_i32_0 = arith.constant 0 : i32
    %c0_i32_1 = arith.constant 0 : i32
    %c0_i32_2 = arith.constant 0 : i32
    return %arg0, %c0_i32, %c0_i32_0, %c0_i32_1 : i32, i32, i32, i32
  }
  func.func @transform_1(%arg0: i32) -> (i32, i32, i32) {
    %c0_i32 = arith.constant 0 : i32
    %c0_i32_0 = arith.constant 0 : i32
    %c0_i32_1 = arith.constant 0 : i32
    %c0_i32_2 = arith.constant 0 : i32
    return %c0_i32, %c0_i32_0, %c0_i32_1 : i32, i32, i32
  }
  func.func @transform_2(%arg0: i32) -> (i32, i32) {
    %c0_i32 = arith.constant 0 : i32
    %c0_i32_0 = arith.constant 0 : i32
    %c0_i32_1 = arith.constant 0 : i32
    return %c0_i32, %c0_i32_0 : i32, i32
  }
  func.func @transform_3(%arg0: i32) -> (i32, i32, i32, i32) {
    %c0_i32 = arith.constant 0 : i32
    %c0_i32_0 = arith.constant 0 : i32
    %c0_i32_1 = arith.constant 0 : i32
    %c0_i32_2 = arith.constant 0 : i32
    return %arg0, %c0_i32, %c0_i32_0, %c0_i32_1 : i32, i32, i32, i32
  }
}

</mosaic_0001>

<llo_original>
// kernel: tpu_custom_call.1
$region0: #{tpu_custom_call.1}
  #allocation0 [shape = 'u32[]', space=smem, size = 0x4, offset = 0x4, fixed_abs, tag = 'smem constant byte address 0x4 - core index']
  #allocation1 [shape = 'u32[72,128]{1,0:T(1,128)}', space=vmem, size = 0x9000, scoped, tag = 'internal scratch']
  %s0 = inlined_call_operand.vmem [shape: f32[2,10,10,16], index: 0, kind: input, shape index: {}]
  %s1 = inlined_call_operand.vmem [shape: f32[9,16,64], index: 1, kind: input, shape index: {}]
  %s2 = inlined_call_operand.vmem [shape: f32[1,64], index: 2, kind: input, shape index: {}]
  %s3 = inlined_call_operand.hbm [shape: f32[2,8,8,64], index: 3, kind: output, shape index: {}]
  %s4 = sld [smem:[#allocation0]]
  $region45: #{tpu_custom_call.1} parent=0
    _
  %s6 = ssub.s32 1, %s4
  %s7 = scalar_select 0, %s6, %s4
  $region1: #{tpu_custom_call.1} parent=0
    #allocation2 [shape = 'u8[65536]{0}', space=vmem, size = 0x10000, scoped, tag = 'output window, operand 0']
    #allocation3 [shape = 's32[2]{0}', space=sflag, size = 0x8, scoped, tag = 'scoped memory for tpu_custom_call.1']
    %8 = vsyncpa [#allocation3], 0
    %s9 = scalar_lea.sflag [#allocation3], 1
    %10 = vsyncpa %s9, 0
    loop: start=0, step=1, limit=4
    $region2: #{tpu_custom_call.1} parent=1 // loop_pre_header
      _
    $region3: #{tpu_custom_call.1} parent=1 // loop_header
      %s12 = sphi 0, %s16
      %p13 = scmp.ge.s32.totalorder %s12, 4
      %s22 = sphi 0, %s24
      %s25 = sphi 0, %s22
      %s26 = sphi 0, %s25
      %s42 = sphi 0, %s26
      %s46 = sphi 0, %s46
      %s48 = sphi 0, %s46
      %s49 = sphi 0, %s48
      %s63 = sphi 0, %s49
      %s67 = sphi 0, %s67
      %s69 = sphi 0, %s67
      %s70 = sphi 0, %s69
      %s84 = sphi 0, %s70
      %s90 = sphi 0, %s92
      %s93 = sphi 0, %s90
      %s94 = sphi 0, %s93
      %s110 = sphi 0, %s94
    $region4: #{tpu_custom_call.1} parent=1 // loop_header_branch
      %15 = sbr.rel (%p13) target = $region8
    $region5: #{tpu_custom_call.1} parent=1 // loop_body
      %s17 = ssub.s32 %s12, 1
      %s18 = ssub.s32 %s12, 2
      %s19 = sadd.s32 %s12, 1
      %s20 = ssub.s32 %s12, %s19
      %p21 = scmp.eq.s32.totalorder %s20, 0
      %s23 = sadd.s32 %s22, 1
      %s24 = scalar_select %p21, %s22, %s23
      %p27 = pneg %p21
      %p28 = scmp.eq.s32.totalorder %s12, 1
      %p29 = por %p27, %p28
      %p30 = scmp.ne.s32.totalorder %s22, %s25
      %p31 = scmp.eq.s32.totalorder %s12, 0
      %p32 = por %p30, %p31
      %p33 = scmp.ne.s32.totalorder %s22, %s25
      %p34 = scmp.eq.s32.totalorder %s17, 1
      %p35 = por %p33, %p34
      %p36 = scmp.ne.s32.totalorder %s25, %s26
      %p37 = scmp.eq.s32.totalorder %s17, 0
      %p38 = por %p36, %p37
      %p39 = scmp.ne.s32.totalorder %s25, %s26
      %p40 = scmp.eq.s32.totalorder %s18, 1
      %p41 = por %p39, %p40
      %p43 = scmp.ne.s32.totalorder %s26, %s42
      %p44 = scmp.eq.s32.totalorder %s18, 0
      %p45 = por %p43, %p44
      %s47 = sadd.s32 %s46, 1
      %p50 = scmp.eq.s32.totalorder %s12, 1
      %p51 = scmp.ne.s32.totalorder %s46, %s48
      %p52 = scmp.eq.s32.totalorder %s12, 0
      %p53 = por %p51, %p52
      %p54 = scmp.ne.s32.totalorder %s46, %s48
      %p55 = scmp.eq.s32.totalorder %s17, 1
      %p56 = por %p54, %p55
      %p57 = scmp.ne.s32.totalorder %s48, %s49
      %p58 = scmp.eq.s32.totalorder %s17, 0
      %p59 = por %p57, %p58
      %p60 = scmp.ne.s32.totalorder %s48, %s49
      %p61 = scmp.eq.s32.totalorder %s18, 1
      %p62 = por %p60, %p61
      %p64 = scmp.ne.s32.totalorder %s49, %s63
      %p65 = scmp.eq.s32.totalorder %s18, 0
      %p66 = por %p64, %p65
      %s68 = sadd.s32 %s67, 1
      %p71 = scmp.eq.s32.totalorder %s12, 1
      %p72 = scmp.ne.s32.totalorder %s67, %s69
      %p73 = scmp.eq.s32.totalorder %s12, 0
      %p74 = por %p72, %p73
      %p75 = scmp.ne.s32.totalorder %s67, %s69
      %p76 = scmp.eq.s32.totalorder %s17, 1
      %p77 = por %p75, %p76
      %p78 = scmp.ne.s32.totalorder %s69, %s70
      %p79 = scmp.eq.s32.totalorder %s17, 0
      %p80 = por %p78, %p79
      %p81 = scmp.ne.s32.totalorder %s69, %s70
      %p82 = scmp.eq.s32.totalorder %s18, 1
      %p83 = por %p81, %p82
      %p85 = scmp.ne.s32.totalorder %s70, %s84
      %p86 = scmp.eq.s32.totalorder %s18, 0
      %p87 = por %p85, %p86
      %s88 = ssub.s32 %s12, %s19
      %p89 = scmp.eq.s32.totalorder %s88, 0
      %s91 = sadd.s32 %s90, 1
      %s92 = scalar_select %p89, %s90, %s91
      %p95 = pneg %p89
      %p96 = scmp.eq.s32.totalorder %s12, 1
      %p97 = por %p95, %p96
      %p98 = scmp.ne.s32.totalorder %s90, %s93
      %p99 = scmp.eq.s32.totalorder %s12, 0
      %p100 = por %p98, %p99
      %p101 = scmp.ne.s32.totalorder %s90, %s93
      %p102 = scmp.eq.s32.totalorder %s17, 1
      %p103 = por %p101, %p102
      %p104 = scmp.ne.s32.totalorder %s93, %s94
      %p105 = scmp.eq.s32.totalorder %s17, 0
      %p106 = por %p104, %p105
      %p107 = scmp.ne.s32.totalorder %s93, %s94
      %p108 = scmp.eq.s32.totalorder %s18, 1
      %p109 = por %p107, %p108
      %p111 = scmp.ne.s32.totalorder %s94, %s110
      %p112 = scmp.eq.s32.totalorder %s18, 0
      %p113 = por %p111, %p112
      %p114 = scmp.le.s32.totalorder 1, %s12
      %p115 = scmp.lt.s32.totalorder %s12, 3
      %p116 = pnand %p114, %p115
      %p117 = pneg %p116
      // Predicated region
      $region9: #{tpu_custom_call.1} parent=5 // pred_check
        _
      $region10: #{tpu_custom_call.1} parent=5 // pred_check_branch
        %119 = sbr.rel (%p116) target = $region12
      $region11: #{tpu_custom_call.1} parent=5 // pred_region
        %s120 = ssub.s32 %s12, 1
        // Predicated region
        $region13: #{tpu_custom_call.1} parent=11 // pred_check
          %p121 = pneg %p59
        $region14: #{tpu_custom_call.1} parent=11 // pred_check_branch
          %123 = sbr.rel (%p121) target = $region16
        $region15: #{tpu_custom_call.1} parent=11 // pred_region
          _
        $region16: #{tpu_custom_call.1} parent=11 // pred_fallthru
          _
        // Predicated region
        $region17: #{tpu_custom_call.1} parent=11 // pred_check
          %p124 = pneg %p80
        $region18: #{tpu_custom_call.1} parent=11 // pred_check_branch
          %126 = sbr.rel (%p124) target = $region20
        $region19: #{tpu_custom_call.1} parent=11 // pred_region
          _
        $region20: #{tpu_custom_call.1} parent=11 // pred_fallthru
          _
      $region12: #{tpu_custom_call.1} parent=5 // pred_fallthru
        _
      %p127 = scmp.lt.s32.totalorder %s12, 2
      // Predicated region
      $region21: #{tpu_custom_call.1} parent=5 // pred_check
        %p128 = pneg %p127
      $region22: #{tpu_custom_call.1} parent=5 // pred_check_branch
        %130 = sbr.rel (%p128) target = $region24
      $region23: #{tpu_custom_call.1} parent=5 // pred_region
        // Predicated region
        $region25: #{tpu_custom_call.1} parent=23 // pred_check
          %p131 = pneg %p32
        $region26: #{tpu_custom_call.1} parent=23 // pred_check_branch
          %133 = sbr.rel (%p131) target = $region28
        $region27: #{tpu_custom_call.1} parent=23 // pred_region
          %p134 = scmp.lt.s32.totalorder %s12, 1
          %s135 = scalar_select %p134, %s12, 1
          %s136 = smul.addr %s135, 20
          %s137 = smul.addr %s136, 8
          %s138 = scalar_lea.vmem %s0, %s137
        $region28: #{tpu_custom_call.1} parent=23 // pred_fallthru
          _
      $region24: #{tpu_custom_call.1} parent=5 // pred_fallthru
        _
      %p139 = scmp.le.s32.totalorder 1, %s12
      %p140 = scmp.lt.s32.totalorder %s12, 3
      %p141 = pnand %p139, %p140
      %p142 = pneg %p141
      // Predicated region
      $region29: #{tpu_custom_call.1} parent=5 // pred_check
        _
      $region30: #{tpu_custom_call.1} parent=5 // pred_check_branch
        %144 = sbr.rel (%p141) target = $region32
      $region31: #{tpu_custom_call.1} parent=5 // pred_region
        %s145 = ssub.s32 %s12, 1
        %p146 = scmp.lt.s32.totalorder %s17, 1
        %s147 = scalar_select %p146, %s17, 1
        %s148 = smul.addr %s147, 20
        %s149 = smul.addr %s148, 8
        %s150 = scalar_lea.vmem %s0, %s149
        %p151 = pneg %p38
        %p152 = pneg %p35
        %p153 = pneg %p59
        %p154 = pneg %p56
        %p155 = pneg %p80
        %p156 = pneg %p77
        %p157 = pneg %p106
        %p158 = pneg %p103
        %s159 = sand.u32 %s93, 1
        %s160 = scalar_lea.sflag [#allocation3], %s159
        %s161 = sand.u32 %s93, 1
        %s162 = smul.addr %s161, 64
        %s163 = scalar_lea.vmem [#allocation2], %s162
        %p164 = scmp.lt.s32.totalorder %s17, 1
        %s165 = scalar_select %p164, %s17, 1
        %s166 = smul.addr %s165, 20
        %s167 = smul.addr %s166, 8
        %s168 = scalar_lea.vmem %s0, %s167
        %v169 = vld [vmem:[%s168] sm:$0xff]
        %v170 = vld [vmem:[%s168 + $0x8] sm:$0x3]
        %v171 = vld [vmem:[%s168 + $0x10] sm:$0xff]
        %v172 = vld [vmem:[%s168 + $0x18] sm:$0x3]
        %v173 = vld [vmem:[%s168 + $0x20] sm:$0xff]
        %v174 = vld [vmem:[%s168 + $0x28] sm:$0x3]
        %v175 = vld [vmem:[%s168 + $0x30] sm:$0xff]
        %v176 = vld [vmem:[%s168 + $0x38] sm:$0x3]
        %v177 = vld [vmem:[%s168 + $0x40] sm:$0xff]
        %v178 = vld [vmem:[%s168 + $0x48] sm:$0x3]
        %v179 = vld [vmem:[%s168 + $0x50] sm:$0xff]
        %v180 = vld [vmem:[%s168 + $0x58] sm:$0x3]
        %v181 = vld [vmem:[%s168 + $0x60] sm:$0xff]
        %v182 = vld [vmem:[%s168 + $0x68] sm:$0x3]
        %v183 = vld [vmem:[%s168 + $0x70] sm:$0xff]
        %v184 = vld [vmem:[%s168 + $0x78] sm:$0x3]
        %v185 = vld [vmem:[%s168 + $0x80] sm:$0xff]
        %v186 = vld [vmem:[%s168 + $0x88] sm:$0x3]
        %v187 = vld [vmem:[%s168 + $0x90] sm:$0xff]
        %v188 = vld [vmem:[%s168 + $0x98] sm:$0x3]
        %v189 = vld [vmem:[%s1] sm:$0xff]
        %v190 = vld [vmem:[%s1 + $0x8] sm:$0xff]
        %vm207 = vcmask 1046528
        %v208 = vrot.slane %v169, 1
        %v209 = vrot.slane %v170, 1
        %v210 = vsel %vm207, %v208, %v209
        %v211 = vrot.slane %v171, 1
        %v212 = vrot.slane %v172, 1
        %v213 = vsel %vm207, %v211, %v212
        %v214 = vrot.slane %v173, 1
        %v215 = vrot.slane %v174, 1
        %v216 = vsel %vm207, %v214, %v215
        %v217 = vrot.slane %v175, 1
        %v218 = vrot.slane %v176, 1
        %v219 = vsel %vm207, %v217, %v218
        %v220 = vrot.slane %v177, 1
        %v221 = vrot.slane %v178, 1
        %v222 = vsel %vm207, %v220, %v221
        %v223 = vrot.slane %v179, 1
        %v224 = vrot.slane %v180, 1
        %v225 = vsel %vm207, %v223, %v224
        %v226 = vrot.slane %v181, 1
        %v227 = vrot.slane %v182, 1
        %v228 = vsel %vm207, %v226, %v227
        %v229 = vrot.slane %v183, 1
        %v230 = vrot.slane %v184, 1
        %v231 = vsel %vm207, %v229, %v230
        %s232 = scalar_lea.vmem %s1, 16
        %v233 = vld [vmem:[%s232] sm:$0xff]
        %v234 = vld [vmem:[%s232 + $0x8] sm:$0xff]
        %vm235 = vcmask 130048
        %v236 = vsel %vm235, %v210, 0
        %v238 = vsel %vm235, %v213, 0
        %v240 = vsel %vm235, %v216, 0
        %v242 = vsel %vm235, %v219, 0
        %v244 = vsel %vm235, %v222, 0
        %v246 = vsel %vm235, %v225, 0
        %v248 = vsel %vm235, %v228, 0
        %v250 = vsel %vm235, %v231, 0
        %252 = vmatpush.msra.mxu0 0.0
        %253 = vmatpush.msra.mxu0 0.0
        %254 = vmatpush.msra.mxu0 0.0
        %255 = vmatpush.msra.mxu0 0.0
        %256 = vmatpush.msra.mxu0 0.0
        %257 = vmatpush.msra.mxu0 0.0
        %258 = vmatpush.msra.mxu0 0.0
        %259 = vmatpush.msra.mxu0 0.0
        %260 = vmatpush.msra.mxu0 0.0
        %261 = vmatpush.msra.mxu0 0.0
        %262 = vmatpush.msra.mxu0 0.0
        %263 = vmatpush.msra.mxu0 0.0
        %264 = vmatpush.msra.mxu0 0.0
        %265 = vmatpush.msra.mxu0 0.0
        %266 = vmatpush.msra.mxu0 %v234
        %267 = vmatpush.msra.mxu0 %v233
        %268 = vmatmul.f32.gmra.mxu0 %v236
        %v269 = vpop.f32.mrf.mxu0
        %v270 = vadd.f32 0.0, %v269
        %271 = vmatmul.f32.gmra.mxu0 %v238
        %v272 = vpop.f32.mrf.mxu0
        %v273 = vadd.f32 0.0, %v272
        %274 = vmatmul.f32.gmra.mxu0 %v240
        %v275 = vpop.f32.mrf.mxu0
        %v276 = vadd.f32 0.0, %v275
        %277 = vmatmul.f32.gmra.mxu0 %v242
        %v278 = vpop.f32.mrf.mxu0
        %v279 = vadd.f32 0.0, %v278
        %280 = vmatmul.f32.gmra.mxu0 %v244
        %v281 = vpop.f32.mrf.mxu0
        %v282 = vadd.f32 0.0, %v281
        %283 = vmatmul.f32.gmra.mxu0 %v246
        %v284 = vpop.f32.mrf.mxu0
        %v285 = vadd.f32 0.0, %v284
        %286 = vmatmul.f32.gmra.mxu0 %v248
        %v287 = vpop.f32.mrf.mxu0
        %v288 = vadd.f32 0.0, %v287
        %289 = vmatmul.f32.gmra.mxu0 %v250
        %v290 = vpop.f32.mrf.mxu0
        %v291 = vadd.f32 0.0, %v290
        %292 = vdwg.mxu0
        %v293 = vsel %vm235, %v169, 0
        %v295 = vsel %vm235, %v171, 0
        %v297 = vsel %vm235, %v173, 0
        %v299 = vsel %vm235, %v175, 0
        %v301 = vsel %vm235, %v177, 0
        %v303 = vsel %vm235, %v179, 0
        %v305 = vsel %vm235, %v181, 0
        %v307 = vsel %vm235, %v183, 0
        %309 = vmatpush.msra.mxu0 0.0
        %310 = vmatpush.msra.mxu0 0.0
        %311 = vmatpush.msra.mxu0 0.0
        %312 = vmatpush.msra.mxu0 0.0
        %313 = vmatpush.msra.mxu0 0.0
        %314 = vmatpush.msra.mxu0 0.0
        %315 = vmatpush.msra.mxu0 0.0
        %316 = vmatpush.msra.mxu0 0.0
        %317 = vmatpush.msra.mxu0 0.0
        %318 = vmatpush.msra.mxu0 0.0
        %319 = vmatpush.msra.mxu0 0.0
        %320 = vmatpush.msra.mxu0 0.0
        %321 = vmatpush.msra.mxu0 0.0
        %322 = vmatpush.msra.mxu0 0.0
        %323 = vmatpush.msra.mxu0 %v190
        %324 = vmatpush.msra.mxu0 %v189
        %325 = vmatmul.f32.gmra.mxu0 %v293
        %v326 = vpop.f32.mrf.mxu0
        %v327 = vadd.f32 %v270, %v326
        %328 = vmatmul.f32.gmra.mxu0 %v295
        %v329 = vpop.f32.mrf.mxu0
        %v330 = vadd.f32 %v273, %v329
        %331 = vmatmul.f32.gmra.mxu0 %v297
        %v332 = vpop.f32.mrf.mxu0
        %v333 = vadd.f32 %v276, %v332
        %334 = vmatmul.f32.gmra.mxu0 %v299
        %v335 = vpop.f32.mrf.mxu0
        %v336 = vadd.f32 %v279, %v335
        %337 = vmatmul.f32.gmra.mxu0 %v301
        %v338 = vpop.f32.mrf.mxu0
        %v339 = vadd.f32 %v282, %v338
        %340 = vmatmul.f32.gmra.mxu0 %v303
        %v341 = vpop.f32.mrf.mxu0
        %v342 = vadd.f32 %v285, %v341
        %343 = vmatmul.f32.gmra.mxu0 %v305
        %v344 = vpop.f32.mrf.mxu0
        %v345 = vadd.f32 %v288, %v344
        %346 = vmatmul.f32.gmra.mxu0 %v307
        %v347 = vpop.f32.mrf.mxu0
        %v348 = vadd.f32 %v291, %v347
        %349 = vdwg.mxu0
        %vm350 = vcmask 1045504
        %v351 = vrot.slane %v169, 2
        %v352 = vrot.slane %v170, 2
        %v353 = vsel %vm350, %v351, %v352
        %v354 = vrot.slane %v171, 2
        %v355 = vrot.slane %v172, 2
        %v356 = vsel %vm350, %v354, %v355
        %v357 = vrot.slane %v173, 2
        %v358 = vrot.slane %v174, 2
        %v359 = vsel %vm350, %v357, %v358
        %v360 = vrot.slane %v175, 2
        %v361 = vrot.slane %v176, 2
        %v362 = vsel %vm350, %v360, %v361
        %v363 = vrot.slane %v177, 2
        %v364 = vrot.slane %v178, 2
        %v365 = vsel %vm350, %v363, %v364
        %v366 = vrot.slane %v179, 2
        %v367 = vrot.slane %v180, 2
        %v368 = vsel %vm350, %v366, %v367
        %v369 = vrot.slane %v181, 2
        %v370 = vrot.slane %v182, 2
        %v371 = vsel %vm350, %v369, %v370
        %v372 = vrot.slane %v183, 2
        %v373 = vrot.slane %v184, 2
        %v374 = vsel %vm350, %v372, %v373
        %s375 = scalar_lea.vmem %s1, 32
        %v376 = vld [vmem:[%s375] sm:$0xff]
        %v377 = vld [vmem:[%s375 + $0x8] sm:$0xff]
        %v378 = vsel %vm235, %v353, 0
        %v380 = vsel %vm235, %v356, 0
        %v382 = vsel %vm235, %v359, 0
        %v384 = vsel %vm235, %v362, 0
        %v386 = vsel %vm235, %v365, 0
        %v388 = vsel %vm235, %v368, 0
        %v390 = vsel %vm235, %v371, 0
        %v392 = vsel %vm235, %v374, 0
        %394 = vmatpush.msra.mxu0 0.0
        %395 = vmatpush.msra.mxu0 0.0
        %396 = vmatpush.msra.mxu0 0.0
        %397 = vmatpush.msra.mxu0 0.0
        %398 = vmatpush.msra.mxu0 0.0
        %399 = vmatpush.msra.mxu0 0.0
        %400 = vmatpush.msra.mxu0 0.0
        %401 = vmatpush.msra.mxu0 0.0
        %402 = vmatpush.msra.mxu0 0.0
        %403 = vmatpush.msra.mxu0 0.0
        %404 = vmatpush.msra.mxu0 0.0
        %405 = vmatpush.msra.mxu0 0.0
        %406 = vmatpush.msra.mxu0 0.0
        %407 = vmatpush.msra.mxu0 0.0
        %408 = vmatpush.msra.mxu0 %v377
        %409 = vmatpush.msra.mxu0 %v376
        %410 = vmatmul.f32.gmra.mxu0 %v378
        %v411 = vpop.f32.mrf.mxu0
        %v412 = vadd.f32 0.0, %v411
        %413 = vmatmul.f32.gmra.mxu0 %v380
        %v414 = vpop.f32.mrf.mxu0
        %v415 = vadd.f32 0.0, %v414
        %416 = vmatmul.f32.gmra.mxu0 %v382
        %v417 = vpop.f32.mrf.mxu0
        %v418 = vadd.f32 0.0, %v417
        %419 = vmatmul.f32.gmra.mxu0 %v384
        %v420 = vpop.f32.mrf.mxu0
        %v421 = vadd.f32 0.0, %v420
        %422 = vmatmul.f32.gmra.mxu0 %v386
        %v423 = vpop.f32.mrf.mxu0
        %v424 = vadd.f32 0.0, %v423
        %425 = vmatmul.f32.gmra.mxu0 %v388
        %v426 = vpop.f32.mrf.mxu0
        %v427 = vadd.f32 0.0, %v426
        %428 = vmatmul.f32.gmra.mxu0 %v390
        %v429 = vpop.f32.mrf.mxu0
        %v430 = vadd.f32 0.0, %v429
        %431 = vmatmul.f32.gmra.mxu0 %v392
        %v432 = vpop.f32.mrf.mxu0
        %v433 = vadd.f32 0.0, %v432
        %434 = vdwg.mxu0
        %v435 = vadd.f32 %v327, %v412
        %v436 = vadd.f32 %v330, %v415
        %v437 = vadd.f32 %v333, %v418
        %v438 = vadd.f32 %v336, %v421
        %v439 = vadd.f32 %v339, %v424
        %v440 = vadd.f32 %v342, %v427
        %v441 = vadd.f32 %v345, %v430
        %v442 = vadd.f32 %v348, %v433
        %s443 = scalar_lea.vmem %s1, 48
        %v444 = vld [vmem:[%s443] sm:$0xff]
        %v445 = vld [vmem:[%s443 + $0x8] sm:$0xff]
        %v447 = vsel %vm235, %v185, 0
        %449 = vmatpush.msra.mxu0 0.0
        %450 = vmatpush.msra.mxu0 0.0
        %451 = vmatpush.msra.mxu0 0.0
        %452 = vmatpush.msra.mxu0 0.0
        %453 = vmatpush.msra.mxu0 0.0
        %454 = vmatpush.msra.mxu0 0.0
        %455 = vmatpush.msra.mxu0 0.0
        %456 = vmatpush.msra.mxu0 0.0
        %457 = vmatpush.msra.mxu0 0.0
        %458 = vmatpush.msra.mxu0 0.0
        %459 = vmatpush.msra.mxu0 0.0
        %460 = vmatpush.msra.mxu0 0.0
        %461 = vmatpush.msra.mxu0 0.0
        %462 = vmatpush.msra.mxu0 0.0
        %463 = vmatpush.msra.mxu0 %v445
        %464 = vmatpush.msra.mxu0 %v444
        %465 = vmatmul.f32.gmra.mxu0 %v295
        %v466 = vpop.f32.mrf.mxu0
        %v467 = vadd.f32 0.0, %v466
        %468 = vmatmul.f32.gmra.mxu0 %v297
        %v469 = vpop.f32.mrf.mxu0
        %v470 = vadd.f32 0.0, %v469
        %471 = vmatmul.f32.gmra.mxu0 %v299
        %v472 = vpop.f32.mrf.mxu0
        %v473 = vadd.f32 0.0, %v472
        %474 = vmatmul.f32.gmra.mxu0 %v301
        %v475 = vpop.f32.mrf.mxu0
        %v476 = vadd.f32 0.0, %v475
        %477 = vmatmul.f32.gmra.mxu0 %v303
        %v478 = vpop.f32.mrf.mxu0
        %v479 = vadd.f32 0.0, %v478
        %480 = vmatmul.f32.gmra.mxu0 %v305
        %v481 = vpop.f32.mrf.mxu0
        %v482 = vadd.f32 0.0, %v481
        %483 = vmatmul.f32.gmra.mxu0 %v307
        %v484 = vpop.f32.mrf.mxu0
        %v485 = vadd.f32 0.0, %v484
        %486 = vmatmul.f32.gmra.mxu0 %v447
        %v487 = vpop.f32.mrf.mxu0
        %v488 = vadd.f32 0.0, %v487
        %489 = vdwg.mxu0
        %v490 = vadd.f32 %v435, %v467
        %v491 = vadd.f32 %v436, %v470
        %v492 = vadd.f32 %v437, %v473
        %v493 = vadd.f32 %v438, %v476
        %v494 = vadd.f32 %v439, %v479
        %v495 = vadd.f32 %v440, %v482
        %v496 = vadd.f32 %v441, %v485
        %v497 = vadd.f32 %v442, %v488
        %v499 = vrot.slane %v185, 1
        %v500 = vrot.slane %v186, 1
        %v501 = vsel %vm207, %v499, %v500
        %s502 = scalar_lea.vmem %s1, 64
        %v503 = vld [vmem:[%s502] sm:$0xff]
        %v504 = vld [vmem:[%s502 + $0x8] sm:$0xff]
        %v505 = vsel %vm235, %v501, 0
        %507 = vmatpush.msra.mxu0 0.0
        %508 = vmatpush.msra.mxu0 0.0
        %509 = vmatpush.msra.mxu0 0.0
        %510 = vmatpush.msra.mxu0 0.0
        %511 = vmatpush.msra.mxu0 0.0
        %512 = vmatpush.msra.mxu0 0.0
        %513 = vmatpush.msra.mxu0 0.0
        %514 = vmatpush.msra.mxu0 0.0
        %515 = vmatpush.msra.mxu0 0.0
        %516 = vmatpush.msra.mxu0 0.0
        %517 = vmatpush.msra.mxu0 0.0
        %518 = vmatpush.msra.mxu0 0.0
        %519 = vmatpush.msra.mxu0 0.0
        %520 = vmatpush.msra.mxu0 0.0
        %521 = vmatpush.msra.mxu0 %v504
        %522 = vmatpush.msra.mxu0 %v503
        %523 = vmatmul.f32.gmra.mxu0 %v238
        %v524 = vpop.f32.mrf.mxu0
        %v525 = vadd.f32 0.0, %v524
        %526 = vmatmul.f32.gmra.mxu0 %v240
        %v527 = vpop.f32.mrf.mxu0
        %v528 = vadd.f32 0.0, %v527
        %529 = vmatmul.f32.gmra.mxu0 %v242
        %v530 = vpop.f32.mrf.mxu0
        %v531 = vadd.f32 0.0, %v530
        %532 = vmatmul.f32.gmra.mxu0 %v244
        %v533 = vpop.f32.mrf.mxu0
        %v534 = vadd.f32 0.0, %v533
        %535 = vmatmul.f32.gmra.mxu0 %v246
        %v536 = vpop.f32.mrf.mxu0
        %v537 = vadd.f32 0.0, %v536
        %538 = vmatmul.f32.gmra.mxu0 %v248
        %v539 = vpop.f32.mrf.mxu0
        %v540 = vadd.f32 0.0, %v539
        %541 = vmatmul.f32.gmra.mxu0 %v250
        %v542 = vpop.f32.mrf.mxu0
        %v543 = vadd.f32 0.0, %v542
        %544 = vmatmul.f32.gmra.mxu0 %v505
        %v545 = vpop.f32.mrf.mxu0
        %v546 = vadd.f32 0.0, %v545
        %547 = vdwg.mxu0
        %v548 = vadd.f32 %v490, %v525
        %v549 = vadd.f32 %v491, %v528
        %v550 = vadd.f32 %v492, %v531
        %v551 = vadd.f32 %v493, %v534
        %v552 = vadd.f32 %v494, %v537
        %v553 = vadd.f32 %v495, %v540
        %v554 = vadd.f32 %v496, %v543
        %v555 = vadd.f32 %v497, %v546
        %v556 = vrot.slane %v185, 2
        %v557 = vrot.slane %v186, 2
        %v558 = vsel %vm350, %v556, %v557
        %s559 = scalar_lea.vmem %s1, 80
        %v560 = vld [vmem:[%s559] sm:$0xff]
        %v561 = vld [vmem:[%s559 + $0x8] sm:$0xff]
        %v562 = vsel %vm235, %v558, 0
        %564 = vmatpush.msra.mxu0 0.0
        %565 = vmatpush.msra.mxu0 0.0
        %566 = vmatpush.msra.mxu0 0.0
        %567 = vmatpush.msra.mxu0 0.0
        %568 = vmatpush.msra.mxu0 0.0
        %569 = vmatpush.msra.mxu0 0.0
        %570 = vmatpush.msra.mxu0 0.0
        %571 = vmatpush.msra.mxu0 0.0
        %572 = vmatpush.msra.mxu0 0.0
        %573 = vmatpush.msra.mxu0 0.0
        %574 = vmatpush.msra.mxu0 0.0
        %575 = vmatpush.msra.mxu0 0.0
        %576 = vmatpush.msra.mxu0 0.0
        %577 = vmatpush.msra.mxu0 0.0
        %578 = vmatpush.msra.mxu0 %v561
        %579 = vmatpush.msra.mxu0 %v560
        %580 = vmatmul.f32.gmra.mxu0 %v380
        %v581 = vpop.f32.mrf.mxu0
        %v582 = vadd.f32 0.0, %v581
        %583 = vmatmul.f32.gmra.mxu0 %v382
        %v584 = vpop.f32.mrf.mxu0
        %v585 = vadd.f32 0.0, %v584
        %586 = vmatmul.f32.gmra.mxu0 %v384
        %v587 = vpop.f32.mrf.mxu0
        %v588 = vadd.f32 0.0, %v587
        %589 = vmatmul.f32.gmra.mxu0 %v386
        %v590 = vpop.f32.mrf.mxu0
        %v591 = vadd.f32 0.0, %v590
        %592 = vmatmul.f32.gmra.mxu0 %v388
        %v593 = vpop.f32.mrf.mxu0
        %v594 = vadd.f32 0.0, %v593
        %595 = vmatmul.f32.gmra.mxu0 %v390
        %v596 = vpop.f32.mrf.mxu0
        %v597 = vadd.f32 0.0, %v596
        %598 = vmatmul.f32.gmra.mxu0 %v392
        %v599 = vpop.f32.mrf.mxu0
        %v600 = vadd.f32 0.0, %v599
        %601 = vmatmul.f32.gmra.mxu0 %v562
        %v602 = vpop.f32.mrf.mxu0
        %v603 = vadd.f32 0.0, %v602
        %604 = vdwg.mxu0
        %v605 = vadd.f32 %v548, %v582
        %v606 = vadd.f32 %v549, %v585
        %v607 = vadd.f32 %v550, %v588
        %v608 = vadd.f32 %v551, %v591
        %v609 = vadd.f32 %v552, %v594
        %v610 = vadd.f32 %v553, %v597
        %v611 = vadd.f32 %v554, %v600
        %v612 = vadd.f32 %v555, %v603
        %s613 = scalar_lea.vmem %s1, 96
        %v614 = vld [vmem:[%s613] sm:$0xff]
        %v615 = vld [vmem:[%s613 + $0x8] sm:$0xff]
        %v617 = vsel %vm235, %v187, 0
        %619 = vmatpush.msra.mxu0 0.0
        %620 = vmatpush.msra.mxu0 0.0
        %621 = vmatpush.msra.mxu0 0.0
        %622 = vmatpush.msra.mxu0 0.0
        %623 = vmatpush.msra.mxu0 0.0
        %624 = vmatpush.msra.mxu0 0.0
        %625 = vmatpush.msra.mxu0 0.0
        %626 = vmatpush.msra.mxu0 0.0
        %627 = vmatpush.msra.mxu0 0.0
        %628 = vmatpush.msra.mxu0 0.0
        %629 = vmatpush.msra.mxu0 0.0
        %630 = vmatpush.msra.mxu0 0.0
        %631 = vmatpush.msra.mxu0 0.0
        %632 = vmatpush.msra.mxu0 0.0
        %633 = vmatpush.msra.mxu0 %v615
        %634 = vmatpush.msra.mxu0 %v614
        %635 = vmatmul.f32.gmra.mxu0 %v297
        %v636 = vpop.f32.mrf.mxu0
        %v637 = vadd.f32 0.0, %v636
        %638 = vmatmul.f32.gmra.mxu0 %v299
        %v639 = vpop.f32.mrf.mxu0
        %v640 = vadd.f32 0.0, %v639
        %641 = vmatmul.f32.gmra.mxu0 %v301
        %v642 = vpop.f32.mrf.mxu0
        %v643 = vadd.f32 0.0, %v642
        %644 = vmatmul.f32.gmra.mxu0 %v303
        %v645 = vpop.f32.mrf.mxu0
        %v646 = vadd.f32 0.0, %v645
        %647 = vmatmul.f32.gmra.mxu0 %v305
        %v648 = vpop.f32.mrf.mxu0
        %v649 = vadd.f32 0.0, %v648
        %650 = vmatmul.f32.gmra.mxu0 %v307
        %v651 = vpop.f32.mrf.mxu0
        %v652 = vadd.f32 0.0, %v651
        %653 = vmatmul.f32.gmra.mxu0 %v447
        %v654 = vpop.f32.mrf.mxu0
        %v655 = vadd.f32 0.0, %v654
        %656 = vmatmul.f32.gmra.mxu0 %v617
        %v657 = vpop.f32.mrf.mxu0
        %v658 = vadd.f32 0.0, %v657
        %659 = vdwg.mxu0
        %v660 = vadd.f32 %v605, %v637
        %v661 = vadd.f32 %v606, %v640
        %v662 = vadd.f32 %v607, %v643
        %v663 = vadd.f32 %v608, %v646
        %v664 = vadd.f32 %v609, %v649
        %v665 = vadd.f32 %v610, %v652
        %v666 = vadd.f32 %v611, %v655
        %v667 = vadd.f32 %v612, %v658
        %v669 = vrot.slane %v187, 1
        %v670 = vrot.slane %v188, 1
        %v671 = vsel %vm207, %v669, %v670
        %s672 = scalar_lea.vmem %s1, 112
        %v673 = vld [vmem:[%s672] sm:$0xff]
        %v674 = vld [vmem:[%s672 + $0x8] sm:$0xff]
        %v675 = vsel %vm235, %v671, 0
        %677 = vmatpush.msra.mxu0 0.0
        %678 = vmatpush.msra.mxu0 0.0
        %679 = vmatpush.msra.mxu0 0.0
        %680 = vmatpush.msra.mxu0 0.0
        %681 = vmatpush.msra.mxu0 0.0
        %682 = vmatpush.msra.mxu0 0.0
        %683 = vmatpush.msra.mxu0 0.0
        %684 = vmatpush.msra.mxu0 0.0
        %685 = vmatpush.msra.mxu0 0.0
        %686 = vmatpush.msra.mxu0 0.0
        %687 = vmatpush.msra.mxu0 0.0
        %688 = vmatpush.msra.mxu0 0.0
        %689 = vmatpush.msra.mxu0 0.0
        %690 = vmatpush.msra.mxu0 0.0
        %691 = vmatpush.msra.mxu0 %v674
        %692 = vmatpush.msra.mxu0 %v673
        %693 = vmatmul.f32.gmra.mxu0 %v240
        %v694 = vpop.f32.mrf.mxu0
        %v695 = vadd.f32 0.0, %v694
        %696 = vmatmul.f32.gmra.mxu0 %v242
        %v697 = vpop.f32.mrf.mxu0
        %v698 = vadd.f32 0.0, %v697
        %699 = vmatmul.f32.gmra.mxu0 %v244
        %v700 = vpop.f32.mrf.mxu0
        %v701 = vadd.f32 0.0, %v700
        %702 = vmatmul.f32.gmra.mxu0 %v246
        %v703 = vpop.f32.mrf.mxu0
        %v704 = vadd.f32 0.0, %v703
        %705 = vmatmul.f32.gmra.mxu0 %v248
        %v706 = vpop.f32.mrf.mxu0
        %v707 = vadd.f32 0.0, %v706
        %708 = vmatmul.f32.gmra.mxu0 %v250
        %v709 = vpop.f32.mrf.mxu0
        %v710 = vadd.f32 0.0, %v709
        %711 = vmatmul.f32.gmra.mxu0 %v505
        %v712 = vpop.f32.mrf.mxu0
        %v713 = vadd.f32 0.0, %v712
        %714 = vmatmul.f32.gmra.mxu0 %v675
        %v715 = vpop.f32.mrf.mxu0
        %v716 = vadd.f32 0.0, %v715
        %717 = vdwg.mxu0
        %v718 = vadd.f32 %v660, %v695
        %v719 = vadd.f32 %v661, %v698
        %v720 = vadd.f32 %v662, %v701
        %v721 = vadd.f32 %v663, %v704
        %v722 = vadd.f32 %v664, %v707
        %v723 = vadd.f32 %v665, %v710
        %v724 = vadd.f32 %v666, %v713
        %v725 = vadd.f32 %v667, %v716
        %v726 = vrot.slane %v187, 2
        %v727 = vrot.slane %v188, 2
        %v728 = vsel %vm350, %v726, %v727
        %s729 = scalar_lea.vmem %s1, 128
        %v730 = vld [vmem:[%s729] sm:$0xff]
        %v731 = vld [vmem:[%s729 + $0x8] sm:$0xff]
        %v732 = vsel %vm235, %v728, 0
        %734 = vmatpush.msra.mxu0 0.0
        %735 = vmatpush.msra.mxu0 0.0
        %736 = vmatpush.msra.mxu0 0.0
        %737 = vmatpush.msra.mxu0 0.0
        %738 = vmatpush.msra.mxu0 0.0
        %739 = vmatpush.msra.mxu0 0.0
        %740 = vmatpush.msra.mxu0 0.0
        %741 = vmatpush.msra.mxu0 0.0
        %742 = vmatpush.msra.mxu0 0.0
        %743 = vmatpush.msra.mxu0 0.0
        %744 = vmatpush.msra.mxu0 0.0
        %745 = vmatpush.msra.mxu0 0.0
        %746 = vmatpush.msra.mxu0 0.0
        %747 = vmatpush.msra.mxu0 0.0
        %748 = vmatpush.msra.mxu0 %v731
        %749 = vmatpush.msra.mxu0 %v730
        %750 = vmatmul.f32.gmra.mxu0 %v382
        %v751 = vpop.f32.mrf.mxu0
        %v752 = vadd.f32 0.0, %v751
        %753 = vmatmul.f32.gmra.mxu0 %v384
        %v754 = vpop.f32.mrf.mxu0
        %v755 = vadd.f32 0.0, %v754
        %756 = vmatmul.f32.gmra.mxu0 %v386
        %v757 = vpop.f32.mrf.mxu0
        %v758 = vadd.f32 0.0, %v757
        %759 = vmatmul.f32.gmra.mxu0 %v388
        %v760 = vpop.f32.mrf.mxu0
        %v761 = vadd.f32 0.0, %v760
        %762 = vmatmul.f32.gmra.mxu0 %v390
        %v763 = vpop.f32.mrf.mxu0
        %v764 = vadd.f32 0.0, %v763
        %765 = vmatmul.f32.gmra.mxu0 %v392
        %v766 = vpop.f32.mrf.mxu0
        %v767 = vadd.f32 0.0, %v766
        %768 = vmatmul.f32.gmra.mxu0 %v562
        %v769 = vpop.f32.mrf.mxu0
        %v770 = vadd.f32 0.0, %v769
        %771 = vmatmul.f32.gmra.mxu0 %v732
        %v772 = vpop.f32.mrf.mxu0
        %v773 = vadd.f32 0.0, %v772
        %774 = vdwg.mxu0
        %v775 = vadd.f32 %v718, %v752
        %v776 = vadd.f32 %v719, %v755
        %v777 = vadd.f32 %v720, %v758
        %v778 = vadd.f32 %v721, %v761
        %v779 = vadd.f32 %v722, %v764
        %v780 = vadd.f32 %v723, %v767
        %v781 = vadd.f32 %v724, %v770
        %v782 = vadd.f32 %v725, %v773
        %v783 = vld [vmem:[%s2] sm:$0x1]
        %v785 = vperm.slane %v783, 0
        %v787 = vadd.f32 %v775, %v785
        %v788 = vadd.f32 %v776, %v785
        %v789 = vadd.f32 %v777, %v785
        %v790 = vadd.f32 %v778, %v785
        %v791 = vadd.f32 %v779, %v785
        %v792 = vadd.f32 %v780, %v785
        %v793 = vadd.f32 %v781, %v785
        %v794 = vadd.f32 %v782, %v785
        %vm795 = vcmask 523264
        %796 = vst.msk [vmem:[%s163] sm:$0xff] %vm795, %v787
        %797 = vst.msk [vmem:[%s163 + $0x8] sm:$0xff] %vm795, %v788
        %798 = vst.msk [vmem:[%s163 + $0x10] sm:$0xff] %vm795, %v789
        %799 = vst.msk [vmem:[%s163 + $0x18] sm:$0xff] %vm795, %v790
        %800 = vst.msk [vmem:[%s163 + $0x20] sm:$0xff] %vm795, %v791
        %801 = vst.msk [vmem:[%s163 + $0x28] sm:$0xff] %vm795, %v792
        %802 = vst.msk [vmem:[%s163 + $0x30] sm:$0xff] %vm795, %v793
        %803 = vst.msk [vmem:[%s163 + $0x38] sm:$0xff] %vm795, %v794
        %s804 = sand.u32 %s93, 1
        %s805 = scalar_lea.sflag [#allocation3], %s804
        %s806 = sand.u32 %s93, 1
        %s807 = smul.addr %s806, 64
        %s808 = scalar_lea.vmem [#allocation2], %s807
        // Predicated region
        $region33: #{tpu_custom_call.1} parent=31 // pred_check
          %p809 = pneg %p103
        $region34: #{tpu_custom_call.1} parent=31 // pred_check_branch
          %811 = sbr.rel (%p809) target = $region36
        $region35: #{tpu_custom_call.1} parent=31 // pred_region
          %813 = vsyncadd %s805, 0
          %s814 = smul.addr %s17, 8
          %s815 = smul.addr %s814, 8
          %s816 = scalar_lea.hbm %s3, %s815
          %s817 = sshll.u32 %s808, 4
          %s818 = int_to_ptr.vmem [resolvable:$true] %s817
          %s819 = sshll.u32 %s816, 4
          %s820 = int_to_ptr.hbm [resolvable:$true] %s819
          %825 = dma.vmem_to_hbm [thread:$0]  %s818, 1024, %s820, %s805, 128, 128, 8
        $region36: #{tpu_custom_call.1} parent=31 // pred_fallthru
          _
      $region32: #{tpu_custom_call.1} parent=5 // pred_fallthru
        _
      %p826 = scmp.le.s32.totalorder 2, %s12
      // Predicated region
      $region37: #{tpu_custom_call.1} parent=5 // pred_check
        %p827 = pneg %p826
      $region38: #{tpu_custom_call.1} parent=5 // pred_check_branch
        %829 = sbr.rel (%p827) target = $region40
      $region39: #{tpu_custom_call.1} parent=5 // pred_region
        %s830 = ssub.s32 %s12, 2
        // Predicated region
        $region41: #{tpu_custom_call.1} parent=39 // pred_check
          %p831 = pneg %p109
        $region42: #{tpu_custom_call.1} parent=39 // pred_check_branch
          %833 = sbr.rel (%p831) target = $region44
        $region43: #{tpu_custom_call.1} parent=39 // pred_region
          %s834 = sand.u32 %s94, 1
          %s835 = scalar_lea.sflag [#allocation3], %s834
          %s836 = sand.u32 %s94, 1
          %s837 = smul.addr %s836, 64
          %s838 = scalar_lea.vmem [#allocation2], %s837
          %840 = dma.done %s835, 1024
        $region44: #{tpu_custom_call.1} parent=39 // pred_fallthru
          _
      $region40: #{tpu_custom_call.1} parent=5 // pred_fallthru
        _
    $region6: #{tpu_custom_call.1} parent=1 // loop_footer
      %s16 = sadd.s32 1, %s12
    $region7: #{tpu_custom_call.1} parent=1 // loop_footer_branch
      %11 = sbr.rel target = $region3
    $region8: #{tpu_custom_call.1} parent=1 // loop_exit
      _
    %841 = vsyncpa [#allocation3], 1
    %s842 = scalar_lea.sflag [#allocation3], 1
    %843 = vsyncpa %s842, 1

</llo_original>
